<compile_context>
chip_gen: v6e
topology: v6e:2x2x1
jax: 0.10.0
libtpu: 0.0.40
codegen_flags: <defaults>
</compile_context>

<pallas_src>
import functools

import jax
import jax.numpy as jnp
from jax.experimental import pallas as pl
from jax.experimental.pallas import tpu as pltpu

_EPS = 1e-5


def _round_up(v, m):
    return ((v + m - 1) // m) * m


# ---------------------------------------------------------------------------
# Kernel: 4 matmuls + fused bias/ReLU, bf16 MXU operands, f32 accumulation.
# ---------------------------------------------------------------------------
def _mlp_kernel(x_ref,
                w1_ref, b1_ref,
                w2_ref, b2_ref,
                w3_ref, b3_ref,
                w4_ref, b4_ref,
                o_ref):
    bf16 = jnp.bfloat16
    f32 = jnp.float32

    x = x_ref[...].astype(bf16)                      # cast in-kernel (no wrapper pass)

    # Layer 1: Linear -> ReLU        (BN1 folded into W2/b2 offline)
    h = jnp.maximum(
        jnp.dot(x, w1_ref[...], preferred_element_type=f32) + b1_ref[...],
        0.0).astype(bf16)

    # Layer 2: Linear -> ReLU        (BN2 folded into W3/b3 offline)
    h = jnp.maximum(
        jnp.dot(h, w2_ref[...], preferred_element_type=f32) + b2_ref[...],
        0.0).astype(bf16)

    # Layer 3: Linear -> ReLU        (BN3 folded into W4/b4 offline)
    h = jnp.maximum(
        jnp.dot(h, w3_ref[...], preferred_element_type=f32) + b3_ref[...],
        0.0).astype(bf16)

    # Output head (lane-dense: classes padded to 128 offline)
    out = jnp.dot(h, w4_ref[...], preferred_element_type=f32) + b4_ref[...]
    o_ref[...] = out.astype(o_ref.dtype)


# ---------------------------------------------------------------------------
# Batch tiling policy
# ---------------------------------------------------------------------------
def _choose_batch_tiling(B, batch_tile):
    if B <= batch_tile:
        # Small batch: a single grid step covering the (8-padded) batch.
        bt = max(_round_up(B, 8), 8)
        return bt, bt
    # Large batch: big tiles (multiple of 128), but cap at ~ceil(B/2) so the
    # grid has >= 2 parallel steps (both TensorCores busy on v7x).
    bt = min(batch_tile, _round_up(-(-B // 2), 128))
    bt = _round_up(bt, 128)
    return bt, _round_up(B, bt)


# ---------------------------------------------------------------------------
# Forward wrapper (weights arrive already folded / padded / bf16)
# ---------------------------------------------------------------------------
@functools.partial(jax.jit,
                   static_argnames=("num_classes", "batch_tile", "out_dtype"))
def eeg_classifier_forward(x, prepared_params, num_classes, *,
                           batch_tile=1024, out_dtype=jnp.float32):
    """Fused MLP forward.

    x: (B, input_features) float32.
    prepared_params: output of prepare_params(fold_params(raw)) — bf16 weights
    stored (in_features, out_features), f32 biases, classes padded to 128.
    """
    w1, b1, w2, b2, w3, b3, w4, b4 = prepared_params
    B, F = x.shape
    assert F == w1.shape[0], "input feature dim mismatch"
    C_pad = w4.shape[1]

    bt, B_pad = _choose_batch_tiling(B, batch_tile)
    if B_pad != B:
        x = jnp.pad(x, ((0, B_pad - B), (0, 0)))     # batch pad only; F untouched

    def full_spec(a):
        # Whole (small) array resident in VMEM, identical block every step.
        return pl.BlockSpec(a.shape, lambda i: (0, 0))

    out = pl.pallas_call(
        _mlp_kernel,
        out_shape=jax.ShapeDtypeStruct((B_pad, C_pad), out_dtype),
        grid_spec=pltpu.PrefetchScalarGridSpec(
            num_scalar_prefetch=0,
            grid=(B_pad // bt,),
            in_specs=[
                pl.BlockSpec((bt, F), lambda i: (i, 0)),   # F == full last dim
                full_spec(w1), full_spec(b1),
                full_spec(w2), full_spec(b2),
                full_spec(w3), full_spec(b3),
                full_spec(w4), full_spec(b4),
            ],
            out_specs=pl.BlockSpec((bt, C_pad), lambda i: (i, 0)),
        ),
        compiler_params=pltpu.CompilerParams(
            dimension_semantics=("parallel",)),
    )(x, w1, b1, w2, b2, w3, b3, w4, b4)

    return out[:B, :num_classes]


# ---------------------------------------------------------------------------
# Parameter construction (mirrors the PyTorch module), BN folding, and
# ONE-TIME kernel-ready preparation (bf16 cast + class padding).
# ---------------------------------------------------------------------------
def init_raw_params(key, input_features, num_classes):
    """Linear weights (stored (in,out)), biases, and BN buffers per layer."""
    dims = [(input_features, 512), (512, 256), (256, 128), (128, num_classes)]
    keys = jax.random.split(key, len(dims) * 6)
    raw = []
    for li, (fin, fout) in enumerate(dims):
        kw, kb, kg, kbe, km, kv = keys[6 * li:6 * li + 6]
        bound = 1.0 / jnp.sqrt(fin)
        w = jax.random.uniform(kw, (fin, fout), jnp.float32, -bound, bound)
        b = jax.random.uniform(kb, (1, fout), jnp.float32, -bound, bound)
        raw.extend([w, b])
        if li < 3:
            # Non-trivial BN running stats so the fold is actually exercised.
            gamma = jax.random.uniform(kg, (1, fout), jnp.float32, 0.8, 1.2)
            beta = jax.random.uniform(kbe, (1, fout), jnp.float32, -0.1, 0.1)
            mean = 0.05 * jax.random.normal(km, (1, fout), jnp.float32)
            var = jax.random.uniform(kv, (1, fout), jnp.float32, 0.8, 1.2)
            raw.extend([gamma, beta, mean, var])
    return tuple(raw)


def fold_params(raw, eps=_EPS):
    """Fold each BatchNorm affine into the *following* Linear (exact in eval)."""
    (w1, b1, g1, be1, m1, v1,
     w2, b2, g2, be2, m2, v2,
     w3, b3, g3, be3, m3, v3,
     w4, b4) = raw

    def scale_shift(g, be, m, v):
        s = g / jnp.sqrt(v + eps)
        return s, be - m * s

    s1, t1 = scale_shift(g1, be1, m1, v1)
    s2, t2 = scale_shift(g2, be2, m2, v2)
    s3, t3 = scale_shift(g3, be3, m3, v3)

    # (h*s + t) @ W + b == h @ (s^T * W) + (t @ W + b)
    w2f, b2f = s1.reshape(-1, 1) * w2, t1 @ w2 + b2
    w3f, b3f = s2.reshape(-1, 1) * w3, t2 @ w3 + b3
    w4f, b4f = s3.reshape(-1, 1) * w4, t3 @ w4 + b4
    return (w1, b1, w2f, b2f, w3f, b3f, w4f, b4f)


def prepare_params(folded):
    """One-time, offline prep: cast weights to bf16 and pad classes to 128.

    Hoisted out of the forward path so no padding / casting HLOs run per call.
    """
    w1, b1, w2, b2, w3, b3, w4, b4 = folded
    bf16 = jnp.bfloat16
    f32 = jnp.float32
    C = w4.shape[1]
    C_pad = _round_up(C, 128)                          # lane-dense output store
    w4_p = jnp.zeros((w4.shape[0], C_pad), bf16).at[:, :C].set(w4.astype(bf16))
    b4_p = jnp.zeros((1, C_pad), f32).at[:, :C].set(b4.astype(f32))
    prepared = (w1.astype(bf16), b1.astype(f32),
                w2.astype(bf16), b2.astype(f32),
                w3.astype(bf16), b3.astype(f32),
                w4_p, b4_p)
    return jax.tree_util.tree_map(jax.device_put, prepared)


# ---------------------------------------------------------------------------
# References
# ---------------------------------------------------------------------------
def reference_forward_f32(x, raw, eps=_EPS):
    """Pure-f32 eval-mode forward of the PyTorch module."""
    (w1, b1, g1, be1, m1, v1,
     w2, b2, g2, be2, m2, v2,
     w3, b3, g3, be3, m3, v3,
     w4, b4) = raw

    def bn(h, g, be, m, v):
        return (h - m) / jnp.sqrt(v + eps) * g + be

    h = bn(jnp.maximum(x @ w1 + b1, 0.0), g1, be1, m1, v1)
    h = bn(jnp.maximum(h @ w2 + b2, 0.0), g2, be2, m2, v2)
    h = bn(jnp.maximum(h @ w3 + b3, 0.0), g3, be3, m3, v3)
    return h @ w4 + b4


def reference_forward_bf16(x, folded):
    """Mirror of the kernel math (bf16 MXU operands, f32 accumulation)."""
    w1, b1, w2, b2, w3, b3, w4, b4 = folded
    bf = jnp.bfloat16
    dot = lambda a, w: jnp.dot(a.astype(bf), w.astype(bf),
                               preferred_element_type=jnp.float32)
    h = jnp.maximum(dot(x, w1) + b1, 0.0)
    h = jnp.maximum(dot(h, w2) + b2, 0.0)
    h = jnp.maximum(dot(h, w3) + b3, 0.0)
    return dot(h, w4) + b4


# ---------------------------------------------------------------------------
if __name__ == "__main__":
    input_features = 64
    num_classes = 10
    batch = 16

    key = jax.random.PRNGKey(0)
    kx, kp = jax.random.split(key)
    x = jax.random.normal(kx, (batch, input_features), jnp.float32)

    raw_params = init_raw_params(kp, input_features, num_classes)
    folded = fold_params(raw_params)
    prepared = prepare_params(folded)          # one-time offline weight prep

    out = eeg_classifier_forward(x, prepared, num_classes)
    out = jax.block_until_ready(out)
    assert out.shape == (batch, num_classes)

    # Tight check against a reference mirroring the kernel math (bf16 MXU
    # operands, f32 accumulation): only reduction-order noise remains.
    ref_bf16 = reference_forward_bf16(x, folded)
    assert jnp.allclose(out, ref_bf16, atol=5e-3, rtol=5e-3), "mismatch vs bf16 mirror"

    # Loose check against the exact f32 eval-mode module semantics
    # (bf16 MXU operands introduce ~1e-2 relative error).
    ref_f32 = reference_forward_f32(x, raw_params)
    assert jnp.allclose(out, ref_f32, atol=1e-1, rtol=1e-1), "mismatch vs f32 reference"

    # Ragged batch (exercises the batch-pad + slice path).
    x13 = jax.random.normal(kx, (13, input_features), jnp.float32)
    out13 = jax.block_until_ready(
        eeg_classifier_forward(x13, prepared, num_classes))
    ref13 = reference_forward_bf16(x13, folded)
    assert out13.shape == (13, num_classes)
    assert jnp.allclose(out13, ref13, atol=5e-3, rtol=5e-3), "ragged-batch mismatch"

    print("KERNEL_OK")
</pallas_src>

<mosaic_0001>
module attributes {stable_mosaic.version = 11 : i64} {
  func.func @_mlp_kernel(%arg0: i32, %arg1: memref<16x64xf32, #tpu.memory_space<vmem>>, %arg2: memref<64x512xbf16, #tpu.memory_space<vmem>>, %arg3: memref<1x512xf32, #tpu.memory_space<vmem>>, %arg4: memref<512x256xbf16, #tpu.memory_space<vmem>>, %arg5: memref<1x256xf32, #tpu.memory_space<vmem>>, %arg6: memref<256x128xbf16, #tpu.memory_space<vmem>>, %arg7: memref<1x128xf32, #tpu.memory_space<vmem>>, %arg8: memref<128x128xbf16, #tpu.memory_space<vmem>>, %arg9: memref<1x128xf32, #tpu.memory_space<vmem>>, %arg10: memref<16x128xf32, #tpu.memory_space<vmem>>) attributes {dimension_semantics = [#tpu.dimension_semantics<parallel>], iteration_bounds = array<i64: 1>, scalar_prefetch = 0 : i64, scratch_operands = 0 : i64, tpu.core_type = #tpu.core_type<tc>, window_params = [{transform_indices = @transform_0, window_bounds = array<i64: 16, 64>}, {pipeline_mode = #tpu.pipeline_mode<synchronous>, transform_indices = @transform_1, window_bounds = array<i64: 64, 512>}, {pipeline_mode = #tpu.pipeline_mode<synchronous>, transform_indices = @transform_2, window_bounds = array<i64: 1, 512>}, {pipeline_mode = #tpu.pipeline_mode<synchronous>, transform_indices = @transform_3, window_bounds = array<i64: 512, 256>}, {pipeline_mode = #tpu.pipeline_mode<synchronous>, transform_indices = @transform_4, window_bounds = array<i64: 1, 256>}, {pipeline_mode = #tpu.pipeline_mode<synchronous>, transform_indices = @transform_5, window_bounds = array<i64: 256, 128>}, {pipeline_mode = #tpu.pipeline_mode<synchronous>, transform_indices = @transform_6, window_bounds = array<i64: 1, 128>}, {pipeline_mode = #tpu.pipeline_mode<synchronous>, transform_indices = @transform_7, window_bounds = array<i64: 128, 128>}, {pipeline_mode = #tpu.pipeline_mode<synchronous>, transform_indices = @transform_8, window_bounds = array<i64: 1, 128>}, {transform_indices = @transform_9, window_bounds = array<i64: 16, 128>}]} {
    %c0 = arith.constant 0 : index
    %c0_0 = arith.constant 0 : index
    %0 = vector.load %arg1[%c0, %c0_0] : memref<16x64xf32, #tpu.memory_space<vmem>>, vector<16x64xf32>
    %1 = arith.truncf %0 : vector<16x64xf32> to vector<16x64xbf16>
    %c0_1 = arith.constant 0 : index
    %c0_2 = arith.constant 0 : index
    %2 = vector.load %arg2[%c0_1, %c0_2] : memref<64x512xbf16, #tpu.memory_space<vmem>>, vector<64x512xbf16>
    %cst = arith.constant dense<0.000000e+00> : vector<16x512xf32>
    %3 = tpu.matmul %1, %2, %cst {dimension_numbers = #tpu.dot_dimension_numbers<[1], [0], [0], [1], [0, 0, 1, 1], [], []>} : vector<16x64xbf16>, vector<64x512xbf16>, vector<16x512xf32> -> vector<16x512xf32>
    %c0_3 = arith.constant 0 : index
    %c0_4 = arith.constant 0 : index
    %4 = vector.load %arg3[%c0_3, %c0_4] : memref<1x512xf32, #tpu.memory_space<vmem>>, vector<1x512xf32>
    %5 = vector.broadcast %4 : vector<1x512xf32> to vector<16x512xf32>
    %6 = arith.addf %3, %5 : vector<16x512xf32>
    %cst_5 = arith.constant 0.000000e+00 : f32
    %7 = vector.broadcast %cst_5 : f32 to vector<16x512xf32>
    %8 = arith.maximumf %6, %7 : vector<16x512xf32>
    %9 = arith.truncf %8 : vector<16x512xf32> to vector<16x512xbf16>
    %c0_6 = arith.constant 0 : index
    %c0_7 = arith.constant 0 : index
    %10 = vector.load %arg4[%c0_6, %c0_7] : memref<512x256xbf16, #tpu.memory_space<vmem>>, vector<512x256xbf16>
    %cst_8 = arith.constant dense<0.000000e+00> : vector<16x256xf32>
    %11 = tpu.matmul %9, %10, %cst_8 {dimension_numbers = #tpu.dot_dimension_numbers<[1], [0], [0], [1], [0, 0, 1, 1], [], []>} : vector<16x512xbf16>, vector<512x256xbf16>, vector<16x256xf32> -> vector<16x256xf32>
    %c0_9 = arith.constant 0 : index
    %c0_10 = arith.constant 0 : index
    %12 = vector.load %arg5[%c0_9, %c0_10] : memref<1x256xf32, #tpu.memory_space<vmem>>, vector<1x256xf32>
    %13 = vector.broadcast %12 : vector<1x256xf32> to vector<16x256xf32>
    %14 = arith.addf %11, %13 : vector<16x256xf32>
    %cst_11 = arith.constant 0.000000e+00 : f32
    %15 = vector.broadcast %cst_11 : f32 to vector<16x256xf32>
    %16 = arith.maximumf %14, %15 : vector<16x256xf32>
    %17 = arith.truncf %16 : vector<16x256xf32> to vector<16x256xbf16>
    %c0_12 = arith.constant 0 : index
    %c0_13 = arith.constant 0 : index
    %18 = vector.load %arg6[%c0_12, %c0_13] : memref<256x128xbf16, #tpu.memory_space<vmem>>, vector<256x128xbf16>
    %cst_14 = arith.constant dense<0.000000e+00> : vector<16x128xf32>
    %19 = tpu.matmul %17, %18, %cst_14 {dimension_numbers = #tpu.dot_dimension_numbers<[1], [0], [0], [1], [0, 0, 1, 1], [], []>} : vector<16x256xbf16>, vector<256x128xbf16>, vector<16x128xf32> -> vector<16x128xf32>
    %c0_15 = arith.constant 0 : index
    %c0_16 = arith.constant 0 : index
    %20 = vector.load %arg7[%c0_15, %c0_16] : memref<1x128xf32, #tpu.memory_space<vmem>>, vector<1x128xf32>
    %21 = vector.broadcast %20 : vector<1x128xf32> to vector<16x128xf32>
    %22 = arith.addf %19, %21 : vector<16x128xf32>
    %cst_17 = arith.constant 0.000000e+00 : f32
    %23 = vector.broadcast %cst_17 : f32 to vector<16x128xf32>
    %24 = arith.maximumf %22, %23 : vector<16x128xf32>
    %25 = arith.truncf %24 : vector<16x128xf32> to vector<16x128xbf16>
    %c0_18 = arith.constant 0 : index
    %c0_19 = arith.constant 0 : index
    %26 = vector.load %arg8[%c0_18, %c0_19] : memref<128x128xbf16, #tpu.memory_space<vmem>>, vector<128x128xbf16>
    %cst_20 = arith.constant dense<0.000000e+00> : vector<16x128xf32>
    %27 = tpu.matmul %25, %26, %cst_20 {dimension_numbers = #tpu.dot_dimension_numbers<[1], [0], [0], [1], [0, 0, 1, 1], [], []>} : vector<16x128xbf16>, vector<128x128xbf16>, vector<16x128xf32> -> vector<16x128xf32>
    %c0_21 = arith.constant 0 : index
    %c0_22 = arith.constant 0 : index
    %28 = vector.load %arg9[%c0_21, %c0_22] : memref<1x128xf32, #tpu.memory_space<vmem>>, vector<1x128xf32>
    %29 = vector.broadcast %28 : vector<1x128xf32> to vector<16x128xf32>
    %30 = arith.addf %27, %29 : vector<16x128xf32>
    %c0_23 = arith.constant 0 : index
    %c0_24 = arith.constant 0 : index
    %31 = vector.load %arg10[%c0_23, %c0_24] : memref<16x128xf32, #tpu.memory_space<vmem>>, vector<16x128xf32>
    tpu.vector_store %arg10[%c0_23, %c0_24], %30 {strides = array<i32>} : memref<16x128xf32, #tpu.memory_space<vmem>>, vector<16x128xf32>,
    return
  }
  func.func @transform_0(%arg0: i32) -> (i32, i32) {
    %c0_i32 = arith.constant 0 : i32
    %c0_i32_0 = arith.constant 0 : i32
    return %arg0, %c0_i32 : i32, i32
  }
  func.func @transform_1(%arg0: i32) -> (i32, i32) {
    %c0_i32 = arith.constant 0 : i32
    %c0_i32_0 = arith.constant 0 : i32
    %c0_i32_1 = arith.constant 0 : i32
    return %c0_i32, %c0_i32_0 : i32, i32
  }
  func.func @transform_2(%arg0: i32) -> (i32, i32) {
    %c0_i32 = arith.constant 0 : i32
    %c0_i32_0 = arith.constant 0 : i32
    %c0_i32_1 = arith.constant 0 : i32
    return %c0_i32, %c0_i32_0 : i32, i32
  }
  func.func @transform_3(%arg0: i32) -> (i32, i32) {
    %c0_i32 = arith.constant 0 : i32
    %c0_i32_0 = arith.constant 0 : i32
    %c0_i32_1 = arith.constant 0 : i32
    return %c0_i32, %c0_i32_0 : i32, i32
  }
  func.func @transform_4(%arg0: i32) -> (i32, i32) {
    %c0_i32 = arith.constant 0 : i32
    %c0_i32_0 = arith.constant 0 : i32
    %c0_i32_1 = arith.constant 0 : i32
    return %c0_i32, %c0_i32_0 : i32, i32
  }
  func.func @transform_5(%arg0: i32) -> (i32, i32) {
    %c0_i32 = arith.constant 0 : i32
    %c0_i32_0 = arith.constant 0 : i32
    %c0_i32_1 = arith.constant 0 : i32
    return %c0_i32, %c0_i32_0 : i32, i32
  }
  func.func @transform_6(%arg0: i32) -> (i32, i32) {
    %c0_i32 = arith.constant 0 : i32
    %c0_i32_0 = arith.constant 0 : i32
    %c0_i32_1 = arith.constant 0 : i32
    return %c0_i32, %c0_i32_0 : i32, i32
  }
  func.func @transform_7(%arg0: i32) -> (i32, i32) {
    %c0_i32 = arith.constant 0 : i32
    %c0_i32_0 = arith.constant 0 : i32
    %c0_i32_1 = arith.constant 0 : i32
    return %c0_i32, %c0_i32_0 : i32, i32
  }
  func.func @transform_8(%arg0: i32) -> (i32, i32) {
    %c0_i32 = arith.constant 0 : i32
    %c0_i32_0 = arith.constant 0 : i32
    %c0_i32_1 = arith.constant 0 : i32
    return %c0_i32, %c0_i32_0 : i32, i32
  }
  func.func @transform_9(%arg0: i32) -> (i32, i32) {
    %c0_i32 = arith.constant 0 : i32
    %c0_i32_0 = arith.constant 0 : i32
    return %arg0, %c0_i32 : i32, i32
  }
}

</mosaic_0001>

<llo_original>
// kernel: eeg_classifier_forward.1
$region0: #{eeg_classifier_forward.1}
  #allocation0 [shape = 'u32[]', space=smem, size = 0x4, offset = 0x4, fixed_abs, tag = 'smem constant byte address 0x4 - core index']
  #allocation1 [shape = 'u32[144,128]{1,0:T(1,128)}', space=vmem, size = 0x12000, scoped, tag = 'internal scratch']
  %s0 = inlined_call_operand.hbm [shape: f32[16,64], index: 0, kind: input, shape index: {}]
  %s1 = inlined_call_operand.hbm [shape: bf16[64,512], index: 1, kind: input, shape index: {}]
  %s2 = inlined_call_operand.hbm [shape: f32[1,512], index: 2, kind: input, shape index: {}]
  %s3 = inlined_call_operand.hbm [shape: bf16[512,256], index: 3, kind: input, shape index: {}]
  %s4 = inlined_call_operand.vmem [shape: f32[1,256], index: 4, kind: input, shape index: {}]
  %s5 = inlined_call_operand.hbm [shape: bf16[256,128], index: 5, kind: input, shape index: {}]
  %s6 = inlined_call_operand.vmem [shape: f32[1,128], index: 6, kind: input, shape index: {}]
  %s7 = inlined_call_operand.hbm [shape: bf16[128,128], index: 7, kind: input, shape index: {}]
  %s8 = inlined_call_operand.vmem [shape: f32[1,128], index: 8, kind: input, shape index: {}]
  %s9 = inlined_call_operand.hbm [shape: f32[16,128], index: 9, kind: output, shape index: {}]
  %s10 = sld [smem:[#allocation0]]
  $region70: #{eeg_classifier_forward.1} parent=0
    _
  %s12 = ssub.s32 1, %s10
  %s13 = scalar_select 0, %s12, %s10
  $region1: #{eeg_classifier_forward.1} parent=0
    #allocation2 [shape = 'u8[8192]{0}', space=vmem, size = 0x2000, scoped, tag = 'input window, operand 0, single buffered']
    #allocation3 [shape = 's32[1]{0}', space=sflag, size = 0x4, scoped, tag = 'scoped memory for eeg_classifier_forward.1']
    #allocation4 [shape = 's32[1]{0}', space=sflag, size = 0x4, scoped, tag = 'scoped memory for eeg_classifier_forward.1']
    #allocation5 [shape = 'u8[65536]{0}', space=vmem, size = 0x10000, scoped, tag = 'input window, operand 1, single buffered']
    #allocation6 [shape = 's32[1]{0}', space=sflag, size = 0x4, scoped, tag = 'scoped memory for eeg_classifier_forward.1']
    #allocation7 [shape = 'u8[2048]{0}', space=vmem, size = 0x800, scoped, tag = 'input window, operand 2, single buffered']
    #allocation8 [shape = 'u8[262144]{0}', space=vmem, size = 0x40000, scoped, tag = 'input window, operand 3, single buffered']
    #allocation9 [shape = 's32[1]{0}', space=sflag, size = 0x4, scoped, tag = 'scoped memory for eeg_classifier_forward.1']
    #allocation10 [shape = 'u8[65536]{0}', space=vmem, size = 0x10000, scoped, tag = 'input window, operand 5, single buffered']
    #allocation11 [shape = 'u8[32768]{0}', space=vmem, size = 0x8000, scoped, tag = 'input window, operand 7, single buffered']
    #allocation12 [shape = 's32[1]{0}', space=sflag, size = 0x4, scoped, tag = 'scoped memory for eeg_classifier_forward.1']
    #allocation13 [shape = 'u8[8192]{0}', space=vmem, size = 0x2000, scoped, tag = 'output window, operand 0, single buffered']
    %14 = vsyncpa [#allocation3], 0
    %15 = vsyncpa [#allocation6], 0
    %16 = vsyncpa [#allocation9], 0
    %17 = vsyncpa [#allocation12], 0
    %18 = vsyncpa [#allocation4], 0
    // Predicated region
    $region2: #{eeg_classifier_forward.1} parent=1 // pred_check
      _
    $region3: #{eeg_classifier_forward.1} parent=1 // pred_check_branch
      %20 = sbr.rel (0) target = $region5
    $region4: #{eeg_classifier_forward.1} parent=1 // pred_region
      %s22 = ssub.s32 256, 256
      %23 = vsyncadd [#allocation3], %s22
      %s24 = sshll.u32 [#allocation2], 4
      %s25 = int_to_ptr.vmem [resolvable:$true] %s24
      %30 = dma.hbm_to_vmem [thread:$0]  %s0, 256, %s25, [#allocation3], 128, 128, 8
    $region5: #{eeg_classifier_forward.1} parent=1 // pred_fallthru
      _
    // Predicated region
    $region6: #{eeg_classifier_forward.1} parent=1 // pred_check
      _
    $region7: #{eeg_classifier_forward.1} parent=1 // pred_check_branch
      %32 = sbr.rel (0) target = $region9
    $region8: #{eeg_classifier_forward.1} parent=1 // pred_region
      %s34 = ssub.s32 2048, 2048
      %35 = vsyncadd [#allocation6], %s34
      %s36 = sshll.u32 [#allocation5], 4
      %s37 = int_to_ptr.vmem [resolvable:$true] %s36
      %42 = dma.hbm_to_vmem [thread:$0]  %s1, 2048, %s37, [#allocation6], 256, 256, 16
    $region9: #{eeg_classifier_forward.1} parent=1 // pred_fallthru
      _
    // Predicated region
    $region10: #{eeg_classifier_forward.1} parent=1 // pred_check
      _
    $region11: #{eeg_classifier_forward.1} parent=1 // pred_check_branch
      %44 = sbr.rel (0) target = $region13
    $region12: #{eeg_classifier_forward.1} parent=1 // pred_region
      %s46 = ssub.s32 64, 64
      %47 = vsyncadd [#allocation6], %s46
      %s49 = sshll.u32 [#allocation7], 4
      %s50 = int_to_ptr.vmem [resolvable:$true] %s49
      %52 = dma.hbm_to_vmem [thread:$0]  %s2, 64, %s50, [#allocation6]
    $region13: #{eeg_classifier_forward.1} parent=1 // pred_fallthru
      _
    // Predicated region
    $region14: #{eeg_classifier_forward.1} parent=1 // pred_check
      _
    $region15: #{eeg_classifier_forward.1} parent=1 // pred_check_branch
      %54 = sbr.rel (0) target = $region17
    $region16: #{eeg_classifier_forward.1} parent=1 // pred_region
      %s56 = ssub.s32 8192, 8192
      %57 = vsyncadd [#allocation9], %s56
      %s58 = sshll.u32 [#allocation8], 4
      %s59 = int_to_ptr.vmem [resolvable:$true] %s58
      %64 = dma.hbm_to_vmem [thread:$0]  %s3, 8192, %s59, [#allocation9], 128, 128, 8
    $region17: #{eeg_classifier_forward.1} parent=1 // pred_fallthru
      _
    // Predicated region
    $region18: #{eeg_classifier_forward.1} parent=1 // pred_check
      _
    $region19: #{eeg_classifier_forward.1} parent=1 // pred_check_branch
      %66 = sbr.rel (0) target = $region21
    $region20: #{eeg_classifier_forward.1} parent=1 // pred_region
      _
    $region21: #{eeg_classifier_forward.1} parent=1 // pred_fallthru
      _
    // Predicated region
    $region22: #{eeg_classifier_forward.1} parent=1 // pred_check
      _
    $region23: #{eeg_classifier_forward.1} parent=1 // pred_check_branch
      %68 = sbr.rel (0) target = $region25
    $region24: #{eeg_classifier_forward.1} parent=1 // pred_region
      %s70 = ssub.s32 2048, 2048
      %71 = vsyncadd [#allocation9], %s70
      %s72 = sshll.u32 [#allocation10], 4
      %s73 = int_to_ptr.vmem [resolvable:$true] %s72
      %78 = dma.hbm_to_vmem [thread:$0]  %s5, 2048, %s73, [#allocation9], 64, 64, 4
    $region25: #{eeg_classifier_forward.1} parent=1 // pred_fallthru
      _
    // Predicated region
    $region26: #{eeg_classifier_forward.1} parent=1 // pred_check
      _
    $region27: #{eeg_classifier_forward.1} parent=1 // pred_check_branch
      %80 = sbr.rel (0) target = $region29
    $region28: #{eeg_classifier_forward.1} parent=1 // pred_region
      _
    $region29: #{eeg_classifier_forward.1} parent=1 // pred_fallthru
      _
    // Predicated region
    $region30: #{eeg_classifier_forward.1} parent=1 // pred_check
      _
    $region31: #{eeg_classifier_forward.1} parent=1 // pred_check_branch
      %82 = sbr.rel (0) target = $region33
    $region32: #{eeg_classifier_forward.1} parent=1 // pred_region
      %s84 = ssub.s32 1024, 1024
      %85 = vsyncadd [#allocation12], %s84
      %s86 = sshll.u32 [#allocation11], 4
      %s87 = int_to_ptr.vmem [resolvable:$true] %s86
      %92 = dma.hbm_to_vmem [thread:$0]  %s7, 1024, %s87, [#allocation12], 64, 64, 4
    $region33: #{eeg_classifier_forward.1} parent=1 // pred_fallthru
      _
    // Predicated region
    $region34: #{eeg_classifier_forward.1} parent=1 // pred_check
      _
    $region35: #{eeg_classifier_forward.1} parent=1 // pred_check_branch
      %94 = sbr.rel (0) target = $region37
    $region36: #{eeg_classifier_forward.1} parent=1 // pred_region
      _
    $region37: #{eeg_classifier_forward.1} parent=1 // pred_fallthru
      _
    // Predicated region
    $region38: #{eeg_classifier_forward.1} parent=1 // pred_check
      _
    $region39: #{eeg_classifier_forward.1} parent=1 // pred_check_branch
      %96 = sbr.rel (0) target = $region41
    $region40: #{eeg_classifier_forward.1} parent=1 // pred_region
      %97 = dma.done [#allocation3], 256
    $region41: #{eeg_classifier_forward.1} parent=1 // pred_fallthru
      _
    // Predicated region
    $region42: #{eeg_classifier_forward.1} parent=1 // pred_check
      _
    $region43: #{eeg_classifier_forward.1} parent=1 // pred_check_branch
      %99 = sbr.rel (0) target = $region45
    $region44: #{eeg_classifier_forward.1} parent=1 // pred_region
      %100 = dma.done [#allocation6], 2048
    $region45: #{eeg_classifier_forward.1} parent=1 // pred_fallthru
      _
    // Predicated region
    $region46: #{eeg_classifier_forward.1} parent=1 // pred_check
      _
    $region47: #{eeg_classifier_forward.1} parent=1 // pred_check_branch
      %102 = sbr.rel (0) target = $region49
    $region48: #{eeg_classifier_forward.1} parent=1 // pred_region
      %103 = dma.done [#allocation6], 64
    $region49: #{eeg_classifier_forward.1} parent=1 // pred_fallthru
      _
    // Predicated region
    $region50: #{eeg_classifier_forward.1} parent=1 // pred_check
      _
    $region51: #{eeg_classifier_forward.1} parent=1 // pred_check_branch
      %105 = sbr.rel (0) target = $region53
    $region52: #{eeg_classifier_forward.1} parent=1 // pred_region
      %106 = dma.done [#allocation9], 8192
    $region53: #{eeg_classifier_forward.1} parent=1 // pred_fallthru
      _
    // Predicated region
    $region54: #{eeg_classifier_forward.1} parent=1 // pred_check
      _
    $region55: #{eeg_classifier_forward.1} parent=1 // pred_check_branch
      %108 = sbr.rel (0) target = $region57
    $region56: #{eeg_classifier_forward.1} parent=1 // pred_region
      %109 = dma.done [#allocation9], 2048
    $region57: #{eeg_classifier_forward.1} parent=1 // pred_fallthru
      _
    // Predicated region
    $region58: #{eeg_classifier_forward.1} parent=1 // pred_check
      _
    $region59: #{eeg_classifier_forward.1} parent=1 // pred_check_branch
      %111 = sbr.rel (0) target = $region61
    $region60: #{eeg_classifier_forward.1} parent=1 // pred_region
      %112 = dma.done [#allocation12], 1024
    $region61: #{eeg_classifier_forward.1} parent=1 // pred_fallthru
      _
    %v114 = vld [vmem:[#allocation2] sm:$0xff]
    %v115 = vld [vmem:[#allocation2 + $0x8] sm:$0xff]
    %v116 = vpack.c.bf16 %v115, %v114
    %v117 = vld [vmem:[#allocation5] sm:$0xff]
    %v118 = vld [vmem:[#allocation5 + $0x8] sm:$0xff]
    %v119 = vld [vmem:[#allocation5 + $0x10] sm:$0xff]
    %v120 = vld [vmem:[#allocation5 + $0x18] sm:$0xff]
    %v121 = vld [vmem:[#allocation5 + $0x20] sm:$0xff]
    %v122 = vld [vmem:[#allocation5 + $0x28] sm:$0xff]
    %v123 = vld [vmem:[#allocation5 + $0x30] sm:$0xff]
    %v124 = vld [vmem:[#allocation5 + $0x38] sm:$0xff]
    %v125 = vld [vmem:[#allocation5 + $0x40] sm:$0xff]
    %v126 = vld [vmem:[#allocation5 + $0x48] sm:$0xff]
    %v127 = vld [vmem:[#allocation5 + $0x50] sm:$0xff]
    %v128 = vld [vmem:[#allocation5 + $0x58] sm:$0xff]
    %v129 = vld [vmem:[#allocation5 + $0x60] sm:$0xff]
    %v130 = vld [vmem:[#allocation5 + $0x68] sm:$0xff]
    %v131 = vld [vmem:[#allocation5 + $0x70] sm:$0xff]
    %v132 = vld [vmem:[#allocation5 + $0x78] sm:$0xff]
    %v133 = vld [vmem:[#allocation7] sm:$0xf]
    %v135 = vlaneseq
    %v136 = vshrl.u32 %v135, 7
    %v137 = vsub.s32 0, %v136
    %v138 = vrot.slane %v133, %v137
    %v139 = vlaneseq
    %v140 = vshrl.u32 %v139, 7
    %v141 = vsub.s32 1, %v140
    %v142 = vrot.slane %v133, %v141
    %v143 = vlaneseq
    %v144 = vshrl.u32 %v143, 7
    %v145 = vsub.s32 2, %v144
    %v146 = vrot.slane %v133, %v145
    %v147 = vlaneseq
    %v148 = vshrl.u32 %v147, 7
    %v149 = vsub.s32 3, %v148
    %v150 = vrot.slane %v133, %v149
    %v171 = vunpack.c.l.b16 %v117
    %v172 = vunpack.c.h.b16 %v117
    %v173 = vunpack.c.l.b16 %v118
    %v174 = vunpack.c.h.b16 %v118
    %v175 = vunpack.c.l.b16 %v119
    %v176 = vunpack.c.h.b16 %v119
    %v177 = vunpack.c.l.b16 %v120
    %v178 = vunpack.c.h.b16 %v120
    %v179 = vunpack.c.l.b16 %v121
    %v180 = vunpack.c.h.b16 %v121
    %v181 = vunpack.c.l.b16 %v122
    %v182 = vunpack.c.h.b16 %v122
    %v183 = vunpack.c.l.b16 %v123
    %v184 = vunpack.c.h.b16 %v123
    %v185 = vunpack.c.l.b16 %v124
    %v186 = vunpack.c.h.b16 %v124
    %v187 = vunpack.c.l.b16 %v125
    %v188 = vunpack.c.h.b16 %v125
    %v189 = vunpack.c.l.b16 %v126
    %v190 = vunpack.c.h.b16 %v126
    %v191 = vunpack.c.l.b16 %v127
    %v192 = vunpack.c.h.b16 %v127
    %v193 = vunpack.c.l.b16 %v128
    %v194 = vunpack.c.h.b16 %v128
    %v195 = vunpack.c.l.b16 %v129
    %v196 = vunpack.c.h.b16 %v129
    %v197 = vunpack.c.l.b16 %v130
    %v198 = vunpack.c.h.b16 %v130
    %v199 = vunpack.c.l.b16 %v131
    %v200 = vunpack.c.h.b16 %v131
    %v201 = vunpack.c.l.b16 %v132
    %v202 = vunpack.c.h.b16 %v132
    %v203 = vpack.c.b16 %v175, %v171
    %v204 = vpack.c.b16 %v176, %v172
    %v205 = vpack.c.b16 %v177, %v173
    %v206 = vpack.c.b16 %v178, %v174
    %v207 = vpack.c.b16 %v183, %v179
    %v208 = vpack.c.b16 %v184, %v180
    %v209 = vpack.c.b16 %v185, %v181
    %v210 = vpack.c.b16 %v186, %v182
    %v211 = vpack.c.b16 %v191, %v187
    %v212 = vpack.c.b16 %v192, %v188
    %v213 = vpack.c.b16 %v193, %v189
    %v214 = vpack.c.b16 %v194, %v190
    %v215 = vpack.c.b16 %v199, %v195
    %v216 = vpack.c.b16 %v200, %v196
    %v217 = vpack.c.b16 %v201, %v197
    %v218 = vpack.c.b16 %v202, %v198
    %vm235 = vcmask 523264
    %v237 = vsel %vm235, %v116, 0
    %239 = vmatprep.subr.bf16.mxu0 0
    %240 = vmatpush1.bf16.msra.mxu0 0
    %241 = vmatprep.subr.bf16.mxu0 0
    %242 = vmatpush1.bf16.msra.mxu0 0
    %243 = vmatprep.subr.bf16.mxu0 0
    %244 = vmatpush1.bf16.msra.mxu0 0
    %245 = vmatprep.subr.bf16.mxu0 0
    %246 = vmatpush1.bf16.msra.mxu0 0
    %247 = vmatprep.subr.bf16.mxu0 %v216
    %248 = vmatpush1.bf16.msra.mxu0 %v215
    %249 = vmatprep.subr.bf16.mxu0 %v212
    %250 = vmatpush1.bf16.msra.mxu0 %v211
    %251 = vmatprep.subr.bf16.mxu0 %v208
    %252 = vmatpush1.bf16.msra.mxu0 %v207
    %253 = vmatprep.subr.bf16.mxu0 %v204
    %254 = vmatpush1.bf16.msra.mxu0 %v203
    %255 = vmatprep.subr.bf16.mxu0 0
    %256 = vmatpush2.bf16.msra.mxu0 0
    %257 = vmatprep.subr.bf16.mxu0 0
    %258 = vmatpush2.bf16.msra.mxu0 0
    %259 = vmatprep.subr.bf16.mxu0 0
    %260 = vmatpush2.bf16.msra.mxu0 0
    %261 = vmatprep.subr.bf16.mxu0 0
    %262 = vmatpush2.bf16.msra.mxu0 0
    %263 = vmatprep.subr.bf16.mxu0 0
    %264 = vmatpush2.bf16.msra.mxu0 0
    %265 = vmatprep.subr.bf16.mxu0 0
    %266 = vmatpush2.bf16.msra.mxu0 0
    %267 = vmatprep.subr.bf16.mxu0 0
    %268 = vmatpush2.bf16.msra.mxu0 0
    %269 = vmatprep.subr.bf16.mxu0 0
    %270 = vmatpush2.bf16.msra.mxu0 0
    %271 = vmatprep.mubr.bf16.mxu0 0
    %272 = vmatmul.mubr.bf16.gmra.mxu0 %v237
    %v273 = vpop.f32.mrf.mxu0
    %v274 = vadd.f32 %v138, %v273
    %v275 = vpop.f32.mrf.mxu0
    %v276 = vadd.f32 %v142, %v275
    %v277 = vpop.f32.mrf.mxu0
    %v278 = vadd.f32 %v138, %v277
    %v279 = vpop.f32.mrf.mxu0
    %v280 = vadd.f32 %v142, %v279
    %281 = vdwg.mxu0
    %282 = vmatprep.subr.bf16.mxu0 0
    %283 = vmatpush1.bf16.msra.mxu0 0
    %284 = vmatprep.subr.bf16.mxu0 0
    %285 = vmatpush1.bf16.msra.mxu0 0
    %286 = vmatprep.subr.bf16.mxu0 0
    %287 = vmatpush1.bf16.msra.mxu0 0
    %288 = vmatprep.subr.bf16.mxu0 0
    %289 = vmatpush1.bf16.msra.mxu0 0
    %290 = vmatprep.subr.bf16.mxu0 %v218
    %291 = vmatpush1.bf16.msra.mxu0 %v217
    %292 = vmatprep.subr.bf16.mxu0 %v214
    %293 = vmatpush1.bf16.msra.mxu0 %v213
    %294 = vmatprep.subr.bf16.mxu0 %v210
    %295 = vmatpush1.bf16.msra.mxu0 %v209
    %296 = vmatprep.subr.bf16.mxu0 %v206
    %297 = vmatpush1.bf16.msra.mxu0 %v205
    %298 = vmatprep.subr.bf16.mxu0 0
    %299 = vmatpush2.bf16.msra.mxu0 0
    %300 = vmatprep.subr.bf16.mxu0 0
    %301 = vmatpush2.bf16.msra.mxu0 0
    %302 = vmatprep.subr.bf16.mxu0 0
    %303 = vmatpush2.bf16.msra.mxu0 0
    %304 = vmatprep.subr.bf16.mxu0 0
    %305 = vmatpush2.bf16.msra.mxu0 0
    %306 = vmatprep.subr.bf16.mxu0 0
    %307 = vmatpush2.bf16.msra.mxu0 0
    %308 = vmatprep.subr.bf16.mxu0 0
    %309 = vmatpush2.bf16.msra.mxu0 0
    %310 = vmatprep.subr.bf16.mxu0 0
    %311 = vmatpush2.bf16.msra.mxu0 0
    %312 = vmatprep.subr.bf16.mxu0 0
    %313 = vmatpush2.bf16.msra.mxu0 0
    %314 = vmatprep.mubr.bf16.mxu0 0
    %315 = vmatmul.mubr.bf16.gmra.mxu0 %v237
    %v316 = vpop.f32.mrf.mxu0
    %v317 = vadd.f32 %v146, %v316
    %v318 = vpop.f32.mrf.mxu0
    %v319 = vadd.f32 %v150, %v318
    %v320 = vpop.f32.mrf.mxu0
    %v321 = vadd.f32 %v146, %v320
    %v322 = vpop.f32.mrf.mxu0
    %v323 = vadd.f32 %v150, %v322
    %324 = vdwg.mxu0
    %v325 = vmax.f32 %v274, 0.0
    %v326 = vmax.f32 %v276, 0.0
    %v327 = vmax.f32 %v317, 0.0
    %v328 = vmax.f32 %v319, 0.0
    %v329 = vmax.f32 %v278, 0.0
    %v330 = vmax.f32 %v280, 0.0
    %v331 = vmax.f32 %v321, 0.0
    %v332 = vmax.f32 %v323, 0.0
    %v333 = vpack.c.bf16 %v329, %v325
    %v334 = vpack.c.bf16 %v330, %v326
    %v335 = vpack.c.bf16 %v331, %v327
    %v336 = vpack.c.bf16 %v332, %v328
    %v337 = vld [vmem:[#allocation8] sm:$0xff]
    %v338 = vld [vmem:[#allocation8 + $0x8] sm:$0xff]
    %v339 = vld [vmem:[#allocation8 + $0x10] sm:$0xff]
    %v340 = vld [vmem:[#allocation8 + $0x18] sm:$0xff]
    %v341 = vld [vmem:[#allocation8 + $0x20] sm:$0xff]
    %v342 = vld [vmem:[#allocation8 + $0x28] sm:$0xff]
    %v343 = vld [vmem:[#allocation8 + $0x30] sm:$0xff]
    %v344 = vld [vmem:[#allocation8 + $0x38] sm:$0xff]
    %v345 = vld [vmem:[#allocation8 + $0x40] sm:$0xff]
    %v346 = vld [vmem:[#allocation8 + $0x48] sm:$0xff]
    %v347 = vld [vmem:[#allocation8 + $0x50] sm:$0xff]
    %v348 = vld [vmem:[#allocation8 + $0x58] sm:$0xff]
    %v349 = vld [vmem:[#allocation8 + $0x60] sm:$0xff]
    %v350 = vld [vmem:[#allocation8 + $0x68] sm:$0xff]
    %v351 = vld [vmem:[#allocation8 + $0x70] sm:$0xff]
    %v352 = vld [vmem:[#allocation8 + $0x78] sm:$0xff]
    %v353 = vld [vmem:[#allocation8 + $0x80] sm:$0xff]
    %v354 = vld [vmem:[#allocation8 + $0x88] sm:$0xff]
    %v355 = vld [vmem:[#allocation8 + $0x90] sm:$0xff]
    %v356 = vld [vmem:[#allocation8 + $0x98] sm:$0xff]
    %v357 = vld [vmem:[#allocation8 + $0xa0] sm:$0xff]
    %v358 = vld [vmem:[#allocation8 + $0xa8] sm:$0xff]
    %v359 = vld [vmem:[#allocation8 + $0xb0] sm:$0xff]
    %v360 = vld [vmem:[#allocation8 + $0xb8] sm:$0xff]
    %v361 = vld [vmem:[#allocation8 + $0xc0] sm:$0xff]
    %v362 = vld [vmem:[#allocation8 + $0xc8] sm:$0xff]
    %v363 = vld [vmem:[#allocation8 + $0xd0] sm:$0xff]
    %v364 = vld [vmem:[#allocation8 + $0xd8] sm:$0xff]
    %v365 = vld [vmem:[#allocation8 + $0xe0] sm:$0xff]
    %v366 = vld [vmem:[#allocation8 + $0xe8] sm:$0xff]
    %v367 = vld [vmem:[#allocation8 + $0xf0] sm:$0xff]
    %v368 = vld [vmem:[#allocation8 + $0xf8] sm:$0xff]
    %v369 = vld [vmem:[#allocation8 + $0x100] sm:$0xff]
    %v370 = vld [vmem:[#allocation8 + $0x108] sm:$0xff]
    %v371 = vld [vmem:[#allocation8 + $0x110] sm:$0xff]
    %v372 = vld [vmem:[#allocation8 + $0x118] sm:$0xff]
    %v373 = vld [vmem:[#allocation8 + $0x120] sm:$0xff]
    %v374 = vld [vmem:[#allocation8 + $0x128] sm:$0xff]
    %v375 = vld [vmem:[#allocation8 + $0x130] sm:$0xff]
    %v376 = vld [vmem:[#allocation8 + $0x138] sm:$0xff]
    %v377 = vld [vmem:[#allocation8 + $0x140] sm:$0xff]
    %v378 = vld [vmem:[#allocation8 + $0x148] sm:$0xff]
    %v379 = vld [vmem:[#allocation8 + $0x150] sm:$0xff]
    %v380 = vld [vmem:[#allocation8 + $0x158] sm:$0xff]
    %v381 = vld [vmem:[#allocation8 + $0x160] sm:$0xff]
    %v382 = vld [vmem:[#allocation8 + $0x168] sm:$0xff]
    %v383 = vld [vmem:[#allocation8 + $0x170] sm:$0xff]
    %v384 = vld [vmem:[#allocation8 + $0x178] sm:$0xff]
    %v385 = vld [vmem:[#allocation8 + $0x180] sm:$0xff]
    %v386 = vld [vmem:[#allocation8 + $0x188] sm:$0xff]
    %v387 = vld [vmem:[#allocation8 + $0x190] sm:$0xff]
    %v388 = vld [vmem:[#allocation8 + $0x198] sm:$0xff]
    %v389 = vld [vmem:[#allocation8 + $0x1a0] sm:$0xff]
    %v390 = vld [vmem:[#allocation8 + $0x1a8] sm:$0xff]
    %v391 = vld [vmem:[#allocation8 + $0x1b0] sm:$0xff]
    %v392 = vld [vmem:[#allocation8 + $0x1b8] sm:$0xff]
    %v393 = vld [vmem:[#allocation8 + $0x1c0] sm:$0xff]
    %v394 = vld [vmem:[#allocation8 + $0x1c8] sm:$0xff]
    %v395 = vld [vmem:[#allocation8 + $0x1d0] sm:$0xff]
    %v396 = vld [vmem:[#allocation8 + $0x1d8] sm:$0xff]
    %v397 = vld [vmem:[#allocation8 + $0x1e0] sm:$0xff]
    %v398 = vld [vmem:[#allocation8 + $0x1e8] sm:$0xff]
    %v399 = vld [vmem:[#allocation8 + $0x1f0] sm:$0xff]
    %v400 = vld [vmem:[#allocation8 + $0x1f8] sm:$0xff]
    %v401 = vld [vmem:[%s4] sm:$0x3]
    %v403 = vlaneseq
    %v404 = vshrl.u32 %v403, 7
    %v405 = vsub.s32 0, %v404
    %v406 = vrot.slane %v401, %v405
    %v407 = vlaneseq
    %v408 = vshrl.u32 %v407, 7
    %v409 = vsub.s32 1, %v408
    %v410 = vrot.slane %v401, %v409
    %v477 = vunpack.c.l.b16 %v337
    %v478 = vunpack.c.h.b16 %v337
    %v479 = vunpack.c.l.b16 %v338
    %v480 = vunpack.c.h.b16 %v338
    %v481 = vunpack.c.l.b16 %v339
    %v482 = vunpack.c.h.b16 %v339
    %v483 = vunpack.c.l.b16 %v340
    %v484 = vunpack.c.h.b16 %v340
    %v485 = vunpack.c.l.b16 %v341
    %v486 = vunpack.c.h.b16 %v341
    %v487 = vunpack.c.l.b16 %v342
    %v488 = vunpack.c.h.b16 %v342
    %v489 = vunpack.c.l.b16 %v343
    %v490 = vunpack.c.h.b16 %v343
    %v491 = vunpack.c.l.b16 %v344
    %v492 = vunpack.c.h.b16 %v344
    %v493 = vunpack.c.l.b16 %v345
    %v494 = vunpack.c.h.b16 %v345
    %v495 = vunpack.c.l.b16 %v346
    %v496 = vunpack.c.h.b16 %v346
    %v497 = vunpack.c.l.b16 %v347
    %v498 = vunpack.c.h.b16 %v347
    %v499 = vunpack.c.l.b16 %v348
    %v500 = vunpack.c.h.b16 %v348
    %v501 = vunpack.c.l.b16 %v349
    %v502 = vunpack.c.h.b16 %v349
    %v503 = vunpack.c.l.b16 %v350
    %v504 = vunpack.c.h.b16 %v350
    %v505 = vunpack.c.l.b16 %v351
    %v506 = vunpack.c.h.b16 %v351
    %v507 = vunpack.c.l.b16 %v352
    %v508 = vunpack.c.h.b16 %v352
    %v509 = vunpack.c.l.b16 %v353
    %v510 = vunpack.c.h.b16 %v353
    %v511 = vunpack.c.l.b16 %v354
    %v512 = vunpack.c.h.b16 %v354
    %v513 = vunpack.c.l.b16 %v355
    %v514 = vunpack.c.h.b16 %v355
    %v515 = vunpack.c.l.b16 %v356
    %v516 = vunpack.c.h.b16 %v356
    %v517 = vunpack.c.l.b16 %v357
    %v518 = vunpack.c.h.b16 %v357
    %v519 = vunpack.c.l.b16 %v358
    %v520 = vunpack.c.h.b16 %v358
    %v521 = vunpack.c.l.b16 %v359
    %v522 = vunpack.c.h.b16 %v359
    %v523 = vunpack.c.l.b16 %v360
    %v524 = vunpack.c.h.b16 %v360
    %v525 = vunpack.c.l.b16 %v361
    %v526 = vunpack.c.h.b16 %v361
    %v527 = vunpack.c.l.b16 %v362
    %v528 = vunpack.c.h.b16 %v362
    %v529 = vunpack.c.l.b16 %v363
    %v530 = vunpack.c.h.b16 %v363
    %v531 = vunpack.c.l.b16 %v364
    %v532 = vunpack.c.h.b16 %v364
    %v533 = vunpack.c.l.b16 %v365
    %v534 = vunpack.c.h.b16 %v365
    %v535 = vunpack.c.l.b16 %v366
    %v536 = vunpack.c.h.b16 %v366
    %v537 = vunpack.c.l.b16 %v367
    %v538 = vunpack.c.h.b16 %v367
    %v539 = vunpack.c.l.b16 %v368
    %v540 = vunpack.c.h.b16 %v368
    %v541 = vunpack.c.l.b16 %v369
    %v542 = vunpack.c.h.b16 %v369
    %v543 = vunpack.c.l.b16 %v370
    %v544 = vunpack.c.h.b16 %v370
    %v545 = vunpack.c.l.b16 %v371
    %v546 = vunpack.c.h.b16 %v371
    %v547 = vunpack.c.l.b16 %v372
    %v548 = vunpack.c.h.b16 %v372
    %v549 = vunpack.c.l.b16 %v373
    %v550 = vunpack.c.h.b16 %v373
    %v551 = vunpack.c.l.b16 %v374
    %v552 = vunpack.c.h.b16 %v374
    %v553 = vunpack.c.l.b16 %v375
    %v554 = vunpack.c.h.b16 %v375
    %v555 = vunpack.c.l.b16 %v376
    %v556 = vunpack.c.h.b16 %v376
    %v557 = vunpack.c.l.b16 %v377
    %v558 = vunpack.c.h.b16 %v377
    %v559 = vunpack.c.l.b16 %v378
    %v560 = vunpack.c.h.b16 %v378
    %v561 = vunpack.c.l.b16 %v379
    %v562 = vunpack.c.h.b16 %v379
    %v563 = vunpack.c.l.b16 %v380
    %v564 = vunpack.c.h.b16 %v380
    %v565 = vunpack.c.l.b16 %v381
    %v566 = vunpack.c.h.b16 %v381
    %v567 = vunpack.c.l.b16 %v382
    %v568 = vunpack.c.h.b16 %v382
    %v569 = vunpack.c.l.b16 %v383
    %v570 = vunpack.c.h.b16 %v383
    %v571 = vunpack.c.l.b16 %v384
    %v572 = vunpack.c.h.b16 %v384
    %v573 = vunpack.c.l.b16 %v385
    %v574 = vunpack.c.h.b16 %v385
    %v575 = vunpack.c.l.b16 %v386
    %v576 = vunpack.c.h.b16 %v386
    %v577 = vunpack.c.l.b16 %v387
    %v578 = vunpack.c.h.b16 %v387
    %v579 = vunpack.c.l.b16 %v388
    %v580 = vunpack.c.h.b16 %v388
    %v581 = vunpack.c.l.b16 %v389
    %v582 = vunpack.c.h.b16 %v389
    %v583 = vunpack.c.l.b16 %v390
    %v584 = vunpack.c.h.b16 %v390
    %v585 = vunpack.c.l.b16 %v391
    %v586 = vunpack.c.h.b16 %v391
    %v587 = vunpack.c.l.b16 %v392
    %v588 = vunpack.c.h.b16 %v392
    %v589 = vunpack.c.l.b16 %v393
    %v590 = vunpack.c.h.b16 %v393
    %v591 = vunpack.c.l.b16 %v394
    %v592 = vunpack.c.h.b16 %v394
    %v593 = vunpack.c.l.b16 %v395
    %v594 = vunpack.c.h.b16 %v395
    %v595 = vunpack.c.l.b16 %v396
    %v596 = vunpack.c.h.b16 %v396
    %v597 = vunpack.c.l.b16 %v397
    %v598 = vunpack.c.h.b16 %v397
    %v599 = vunpack.c.l.b16 %v398
    %v600 = vunpack.c.h.b16 %v398
    %v601 = vunpack.c.l.b16 %v399
    %v602 = vunpack.c.h.b16 %v399
    %v603 = vunpack.c.l.b16 %v400
    %v604 = vunpack.c.h.b16 %v400
    %v605 = vpack.c.b16 %v479, %v477
    %v606 = vpack.c.b16 %v480, %v478
    %v607 = vpack.c.b16 %v483, %v481
    %v608 = vpack.c.b16 %v484, %v482
    %v609 = vpack.c.b16 %v487, %v485
    %v610 = vpack.c.b16 %v488, %v486
    %v611 = vpack.c.b16 %v491, %v489
    %v612 = vpack.c.b16 %v492, %v490
    %v613 = vpack.c.b16 %v495, %v493
    %v614 = vpack.c.b16 %v496, %v494
    %v615 = vpack.c.b16 %v499, %v497
    %v616 = vpack.c.b16 %v500, %v498
    %v617 = vpack.c.b16 %v503, %v501
    %v618 = vpack.c.b16 %v504, %v502
    %v619 = vpack.c.b16 %v507, %v505
    %v620 = vpack.c.b16 %v508, %v506
    %v621 = vpack.c.b16 %v511, %v509
    %v622 = vpack.c.b16 %v512, %v510
    %v623 = vpack.c.b16 %v515, %v513
    %v624 = vpack.c.b16 %v516, %v514
    %v625 = vpack.c.b16 %v519, %v517
    %v626 = vpack.c.b16 %v520, %v518
    %v627 = vpack.c.b16 %v523, %v521
    %v628 = vpack.c.b16 %v524, %v522
    %v629 = vpack.c.b16 %v527, %v525
    %v630 = vpack.c.b16 %v528, %v526
    %v631 = vpack.c.b16 %v531, %v529
    %v632 = vpack.c.b16 %v532, %v530
    %v633 = vpack.c.b16 %v535, %v533
    %v634 = vpack.c.b16 %v536, %v534
    %v635 = vpack.c.b16 %v539, %v537
    %v636 = vpack.c.b16 %v540, %v538
    %v637 = vpack.c.b16 %v543, %v541
    %v638 = vpack.c.b16 %v544, %v542
    %v639 = vpack.c.b16 %v547, %v545
    %v640 = vpack.c.b16 %v548, %v546
    %v641 = vpack.c.b16 %v551, %v549
    %v642 = vpack.c.b16 %v552, %v550
    %v643 = vpack.c.b16 %v555, %v553
    %v644 = vpack.c.b16 %v556, %v554
    %v645 = vpack.c.b16 %v559, %v557
    %v646 = vpack.c.b16 %v560, %v558
    %v647 = vpack.c.b16 %v563, %v561
    %v648 = vpack.c.b16 %v564, %v562
    %v649 = vpack.c.b16 %v567, %v565
    %v650 = vpack.c.b16 %v568, %v566
    %v651 = vpack.c.b16 %v571, %v569
    %v652 = vpack.c.b16 %v572, %v570
    %v653 = vpack.c.b16 %v575, %v573
    %v654 = vpack.c.b16 %v576, %v574
    %v655 = vpack.c.b16 %v579, %v577
    %v656 = vpack.c.b16 %v580, %v578
    %v657 = vpack.c.b16 %v583, %v581
    %v658 = vpack.c.b16 %v584, %v582
    %v659 = vpack.c.b16 %v587, %v585
    %v660 = vpack.c.b16 %v588, %v586
    %v661 = vpack.c.b16 %v591, %v589
    %v662 = vpack.c.b16 %v592, %v590
    %v663 = vpack.c.b16 %v595, %v593
    %v664 = vpack.c.b16 %v596, %v594
    %v665 = vpack.c.b16 %v599, %v597
    %v666 = vpack.c.b16 %v600, %v598
    %v667 = vpack.c.b16 %v603, %v601
    %v668 = vpack.c.b16 %v604, %v602
    %733 = vmatprep.subr.bf16.mxu0 %v620
    %734 = vmatpush1.bf16.msra.mxu0 %v619
    %735 = vmatprep.subr.bf16.mxu0 %v618
    %736 = vmatpush1.bf16.msra.mxu0 %v617
    %737 = vmatprep.subr.bf16.mxu0 %v616
    %738 = vmatpush1.bf16.msra.mxu0 %v615
    %739 = vmatprep.subr.bf16.mxu0 %v614
    %740 = vmatpush1.bf16.msra.mxu0 %v613
    %741 = vmatprep.subr.bf16.mxu0 %v612
    %742 = vmatpush1.bf16.msra.mxu0 %v611
    %743 = vmatprep.subr.bf16.mxu0 %v610
    %744 = vmatpush1.bf16.msra.mxu0 %v609
    %745 = vmatprep.subr.bf16.mxu0 %v608
    %746 = vmatpush1.bf16.msra.mxu0 %v607
    %747 = vmatprep.subr.bf16.mxu0 %v606
    %748 = vmatpush1.bf16.msra.mxu0 %v605
    %749 = vmatprep.subr.bf16.mxu0 %v636
    %750 = vmatpush2.bf16.msra.mxu0 %v635
    %751 = vmatprep.subr.bf16.mxu0 %v634
    %752 = vmatpush2.bf16.msra.mxu0 %v633
    %753 = vmatprep.subr.bf16.mxu0 %v632
    %754 = vmatpush2.bf16.msra.mxu0 %v631
    %755 = vmatprep.subr.bf16.mxu0 %v630
    %756 = vmatpush2.bf16.msra.mxu0 %v629
    %757 = vmatprep.subr.bf16.mxu0 %v628
    %758 = vmatpush2.bf16.msra.mxu0 %v627
    %759 = vmatprep.subr.bf16.mxu0 %v626
    %760 = vmatpush2.bf16.msra.mxu0 %v625
    %761 = vmatprep.subr.bf16.mxu0 %v624
    %762 = vmatpush2.bf16.msra.mxu0 %v623
    %763 = vmatprep.subr.bf16.mxu0 %v622
    %764 = vmatpush2.bf16.msra.mxu0 %v621
    %765 = vmatprep.mubr.bf16.mxu0 %v334
    %766 = vmatmul.mubr.bf16.gmra.mxu0 %v333
    %v767 = vpop.f32.mrf.mxu0
    %v768 = vadd.f32 %v406, %v767
    %v769 = vpop.f32.mrf.mxu0
    %v770 = vadd.f32 %v410, %v769
    %v771 = vpop.f32.mrf.mxu0
    %v772 = vadd.f32 %v406, %v771
    %v773 = vpop.f32.mrf.mxu0
    %v774 = vadd.f32 %v410, %v773
    %775 = vdwg.mxu0
    %776 = vmatprep.subr.bf16.mxu0 %v652
    %777 = vmatpush1.bf16.msra.mxu0 %v651
    %778 = vmatprep.subr.bf16.mxu0 %v650
    %779 = vmatpush1.bf16.msra.mxu0 %v649
    %780 = vmatprep.subr.bf16.mxu0 %v648
    %781 = vmatpush1.bf16.msra.mxu0 %v647
    %782 = vmatprep.subr.bf16.mxu0 %v646
    %783 = vmatpush1.bf16.msra.mxu0 %v645
    %784 = vmatprep.subr.bf16.mxu0 %v644
    %785 = vmatpush1.bf16.msra.mxu0 %v643
    %786 = vmatprep.subr.bf16.mxu0 %v642
    %787 = vmatpush1.bf16.msra.mxu0 %v641
    %788 = vmatprep.subr.bf16.mxu0 %v640
    %789 = vmatpush1.bf16.msra.mxu0 %v639
    %790 = vmatprep.subr.bf16.mxu0 %v638
    %791 = vmatpush1.bf16.msra.mxu0 %v637
    %792 = vmatprep.subr.bf16.mxu0 %v668
    %793 = vmatpush2.bf16.msra.mxu0 %v667
    %794 = vmatprep.subr.bf16.mxu0 %v666
    %795 = vmatpush2.bf16.msra.mxu0 %v665
    %796 = vmatprep.subr.bf16.mxu0 %v664
    %797 = vmatpush2.bf16.msra.mxu0 %v663
    %798 = vmatprep.subr.bf16.mxu0 %v662
    %799 = vmatpush2.bf16.msra.mxu0 %v661
    %800 = vmatprep.subr.bf16.mxu0 %v660
    %801 = vmatpush2.bf16.msra.mxu0 %v659
    %802 = vmatprep.subr.bf16.mxu0 %v658
    %803 = vmatpush2.bf16.msra.mxu0 %v657
    %804 = vmatprep.subr.bf16.mxu0 %v656
    %805 = vmatpush2.bf16.msra.mxu0 %v655
    %806 = vmatprep.subr.bf16.mxu0 %v654
    %807 = vmatpush2.bf16.msra.mxu0 %v653
    %808 = vmatprep.mubr.bf16.mxu0 %v336
    %809 = vmatmul.mubr.bf16.gmra.mxu0 %v335
    %v810 = vpop.f32.mrf.mxu0
    %v811 = vadd.f32 %v768, %v810
    %v812 = vpop.f32.mrf.mxu0
    %v813 = vadd.f32 %v770, %v812
    %v814 = vpop.f32.mrf.mxu0
    %v815 = vadd.f32 %v772, %v814
    %v816 = vpop.f32.mrf.mxu0
    %v817 = vadd.f32 %v774, %v816
    %818 = vdwg.mxu0
    %v819 = vmax.f32 %v811, 0.0
    %v820 = vmax.f32 %v813, 0.0
    %v821 = vmax.f32 %v815, 0.0
    %v822 = vmax.f32 %v817, 0.0
    %v823 = vpack.c.bf16 %v821, %v819
    %v824 = vpack.c.bf16 %v822, %v820
    %v825 = vld [vmem:[#allocation10] sm:$0xf]
    %v826 = vld [vmem:[#allocation10 + $0x4] sm:$0xf]
    %v827 = vld [vmem:[#allocation10 + $0x8] sm:$0xf]
    %v828 = vld [vmem:[#allocation10 + $0xc] sm:$0xf]
    %v829 = vld [vmem:[#allocation10 + $0x10] sm:$0xf]
    %v830 = vld [vmem:[#allocation10 + $0x14] sm:$0xf]
    %v831 = vld [vmem:[#allocation10 + $0x18] sm:$0xf]
    %v832 = vld [vmem:[#allocation10 + $0x1c] sm:$0xf]
    %v833 = vld [vmem:[#allocation10 + $0x20] sm:$0xf]
    %v834 = vld [vmem:[#allocation10 + $0x24] sm:$0xf]
    %v835 = vld [vmem:[#allocation10 + $0x28] sm:$0xf]
    %v836 = vld [vmem:[#allocation10 + $0x2c] sm:$0xf]
    %v837 = vld [vmem:[#allocation10 + $0x30] sm:$0xf]
    %v838 = vld [vmem:[#allocation10 + $0x34] sm:$0xf]
    %v839 = vld [vmem:[#allocation10 + $0x38] sm:$0xf]
    %v840 = vld [vmem:[#allocation10 + $0x3c] sm:$0xf]
    %v841 = vld [vmem:[#allocation10 + $0x40] sm:$0xf]
    %v842 = vld [vmem:[#allocation10 + $0x44] sm:$0xf]
    %v843 = vld [vmem:[#allocation10 + $0x48] sm:$0xf]
    %v844 = vld [vmem:[#allocation10 + $0x4c] sm:$0xf]
    %v845 = vld [vmem:[#allocation10 + $0x50] sm:$0xf]
    %v846 = vld [vmem:[#allocation10 + $0x54] sm:$0xf]
    %v847 = vld [vmem:[#allocation10 + $0x58] sm:$0xf]
    %v848 = vld [vmem:[#allocation10 + $0x5c] sm:$0xf]
    %v849 = vld [vmem:[#allocation10 + $0x60] sm:$0xf]
    %v850 = vld [vmem:[#allocation10 + $0x64] sm:$0xf]
    %v851 = vld [vmem:[#allocation10 + $0x68] sm:$0xf]
    %v852 = vld [vmem:[#allocation10 + $0x6c] sm:$0xf]
    %v853 = vld [vmem:[#allocation10 + $0x70] sm:$0xf]
    %v854 = vld [vmem:[#allocation10 + $0x74] sm:$0xf]
    %v855 = vld [vmem:[#allocation10 + $0x78] sm:$0xf]
    %v856 = vld [vmem:[#allocation10 + $0x7c] sm:$0xf]
    %v857 = vld [vmem:[%s6] sm:$0x1]
    %v859 = vlaneseq
    %v860 = vshrl.u32 %v859, 7
    %v861 = vsub.s32 0, %v860
    %v862 = vrot.slane %v857, %v861
    %v896 = vunpack.c.l.b16 %v825
    %v897 = vunpack.c.l.b16 %v826
    %v898 = vunpack.c.l.b16 %v827
    %v899 = vunpack.c.l.b16 %v828
    %v900 = vunpack.c.l.b16 %v829
    %v901 = vunpack.c.l.b16 %v830
    %v902 = vunpack.c.l.b16 %v831
    %v903 = vunpack.c.l.b16 %v832
    %v904 = vunpack.c.l.b16 %v833
    %v905 = vunpack.c.l.b16 %v834
    %v906 = vunpack.c.l.b16 %v835
    %v907 = vunpack.c.l.b16 %v836
    %v908 = vunpack.c.l.b16 %v837
    %v909 = vunpack.c.l.b16 %v838
    %v910 = vunpack.c.l.b16 %v839
    %v911 = vunpack.c.l.b16 %v840
    %v912 = vunpack.c.l.b16 %v841
    %v913 = vunpack.c.l.b16 %v842
    %v914 = vunpack.c.l.b16 %v843
    %v915 = vunpack.c.l.b16 %v844
    %v916 = vunpack.c.l.b16 %v845
    %v917 = vunpack.c.l.b16 %v846
    %v918 = vunpack.c.l.b16 %v847
    %v919 = vunpack.c.l.b16 %v848
    %v920 = vunpack.c.l.b16 %v849
    %v921 = vunpack.c.l.b16 %v850
    %v922 = vunpack.c.l.b16 %v851
    %v923 = vunpack.c.l.b16 %v852
    %v924 = vunpack.c.l.b16 %v853
    %v925 = vunpack.c.l.b16 %v854
    %v926 = vunpack.c.l.b16 %v855
    %v927 = vunpack.c.l.b16 %v856
    %v928 = vpack.c.b16 %v897, %v896
    %v929 = vpack.c.b16 %v899, %v898
    %v930 = vpack.c.b16 %v901, %v900
    %v931 = vpack.c.b16 %v903, %v902
    %v932 = vpack.c.b16 %v905, %v904
    %v933 = vpack.c.b16 %v907, %v906
    %v934 = vpack.c.b16 %v909, %v908
    %v935 = vpack.c.b16 %v911, %v910
    %v936 = vpack.c.b16 %v913, %v912
    %v937 = vpack.c.b16 %v915, %v914
    %v938 = vpack.c.b16 %v917, %v916
    %v939 = vpack.c.b16 %v919, %v918
    %v940 = vpack.c.b16 %v921, %v920
    %v941 = vpack.c.b16 %v923, %v922
    %v942 = vpack.c.b16 %v925, %v924
    %v943 = vpack.c.b16 %v927, %v926
    %960 = vmatprep.subr.bf16.mxu0 0
    %961 = vmatpush1.bf16.msra.mxu0 %v935
    %962 = vmatprep.subr.bf16.mxu0 0
    %963 = vmatpush1.bf16.msra.mxu0 %v934
    %964 = vmatprep.subr.bf16.mxu0 0
    %965 = vmatpush1.bf16.msra.mxu0 %v933
    %966 = vmatprep.subr.bf16.mxu0 0
    %967 = vmatpush1.bf16.msra.mxu0 %v932
    %968 = vmatprep.subr.bf16.mxu0 0
    %969 = vmatpush1.bf16.msra.mxu0 %v931
    %970 = vmatprep.subr.bf16.mxu0 0
    %971 = vmatpush1.bf16.msra.mxu0 %v930
    %972 = vmatprep.subr.bf16.mxu0 0
    %973 = vmatpush1.bf16.msra.mxu0 %v929
    %974 = vmatprep.subr.bf16.mxu0 0
    %975 = vmatpush1.bf16.msra.mxu0 %v928
    %976 = vmatprep.subr.bf16.mxu0 0
    %977 = vmatpush2.bf16.msra.mxu0 %v943
    %978 = vmatprep.subr.bf16.mxu0 0
    %979 = vmatpush2.bf16.msra.mxu0 %v942
    %980 = vmatprep.subr.bf16.mxu0 0
    %981 = vmatpush2.bf16.msra.mxu0 %v941
    %982 = vmatprep.subr.bf16.mxu0 0
    %983 = vmatpush2.bf16.msra.mxu0 %v940
    %984 = vmatprep.subr.bf16.mxu0 0
    %985 = vmatpush2.bf16.msra.mxu0 %v939
    %986 = vmatprep.subr.bf16.mxu0 0
    %987 = vmatpush2.bf16.msra.mxu0 %v938
    %988 = vmatprep.subr.bf16.mxu0 0
    %989 = vmatpush2.bf16.msra.mxu0 %v937
    %990 = vmatprep.subr.bf16.mxu0 0
    %991 = vmatpush2.bf16.msra.mxu0 %v936
    %992 = vmatprep.mubr.bf16.mxu0 %v824
    %993 = vmatmul.mubr.bf16.gmra.mxu0 %v823
    %v994 = vpop.f32.mrf.mxu0
    %v995 = vadd.f32 %v862, %v994
    %v996 = vpop.f32.mrf.mxu0
    %v997 = vpop.f32.mrf.mxu0
    %v998 = vadd.f32 %v862, %v997
    %v999 = vpop.f32.mrf.mxu0
    %1000 = vdwg.mxu0
    %v1001 = vmax.f32 %v995, 0.0
    %v1002 = vmax.f32 %v998, 0.0
    %v1003 = vpack.c.bf16 %v1002, %v1001
    %v1004 = vld [vmem:[#allocation11] sm:$0xf]
    %v1005 = vld [vmem:[#allocation11 + $0x4] sm:$0xf]
    %v1006 = vld [vmem:[#allocation11 + $0x8] sm:$0xf]
    %v1007 = vld [vmem:[#allocation11 + $0xc] sm:$0xf]
    %v1008 = vld [vmem:[#allocation11 + $0x10] sm:$0xf]
    %v1009 = vld [vmem:[#allocation11 + $0x14] sm:$0xf]
    %v1010 = vld [vmem:[#allocation11 + $0x18] sm:$0xf]
    %v1011 = vld [vmem:[#allocation11 + $0x1c] sm:$0xf]
    %v1012 = vld [vmem:[#allocation11 + $0x20] sm:$0xf]
    %v1013 = vld [vmem:[#allocation11 + $0x24] sm:$0xf]
    %v1014 = vld [vmem:[#allocation11 + $0x28] sm:$0xf]
    %v1015 = vld [vmem:[#allocation11 + $0x2c] sm:$0xf]
    %v1016 = vld [vmem:[#allocation11 + $0x30] sm:$0xf]
    %v1017 = vld [vmem:[#allocation11 + $0x34] sm:$0xf]
    %v1018 = vld [vmem:[#allocation11 + $0x38] sm:$0xf]
    %v1019 = vld [vmem:[#allocation11 + $0x3c] sm:$0xf]
    %v1020 = vld [vmem:[%s8] sm:$0x1]
    %v1022 = vlaneseq
    %v1023 = vshrl.u32 %v1022, 7
    %v1024 = vsub.s32 0, %v1023
    %v1025 = vrot.slane %v1020, %v1024
    %v1043 = vunpack.c.l.b16 %v1004
    %v1044 = vunpack.c.l.b16 %v1005
    %v1045 = vunpack.c.l.b16 %v1006
    %v1046 = vunpack.c.l.b16 %v1007
    %v1047 = vunpack.c.l.b16 %v1008
    %v1048 = vunpack.c.l.b16 %v1009
    %v1049 = vunpack.c.l.b16 %v1010
    %v1050 = vunpack.c.l.b16 %v1011
    %v1051 = vunpack.c.l.b16 %v1012
    %v1052 = vunpack.c.l.b16 %v1013
    %v1053 = vunpack.c.l.b16 %v1014
    %v1054 = vunpack.c.l.b16 %v1015
    %v1055 = vunpack.c.l.b16 %v1016
    %v1056 = vunpack.c.l.b16 %v1017
    %v1057 = vunpack.c.l.b16 %v1018
    %v1058 = vunpack.c.l.b16 %v1019
    %v1059 = vpack.c.b16 %v1044, %v1043
    %v1060 = vpack.c.b16 %v1046, %v1045
    %v1061 = vpack.c.b16 %v1048, %v1047
    %v1062 = vpack.c.b16 %v1050, %v1049
    %v1063 = vpack.c.b16 %v1052, %v1051
    %v1064 = vpack.c.b16 %v1054, %v1053
    %v1065 = vpack.c.b16 %v1056, %v1055
    %v1066 = vpack.c.b16 %v1058, %v1057
    %1075 = vmatprep.subr.bf16.mxu0 0
    %1076 = vmatpush1.bf16.msra.mxu0 %v1066
    %1077 = vmatprep.subr.bf16.mxu0 0
    %1078 = vmatpush1.bf16.msra.mxu0 %v1065
    %1079 = vmatprep.subr.bf16.mxu0 0
    %1080 = vmatpush1.bf16.msra.mxu0 %v1064
    %1081 = vmatprep.subr.bf16.mxu0 0
    %1082 = vmatpush1.bf16.msra.mxu0 %v1063
    %1083 = vmatprep.subr.bf16.mxu0 0
    %1084 = vmatpush1.bf16.msra.mxu0 %v1062
    %1085 = vmatprep.subr.bf16.mxu0 0
    %1086 = vmatpush1.bf16.msra.mxu0 %v1061
    %1087 = vmatprep.subr.bf16.mxu0 0
    %1088 = vmatpush1.bf16.msra.mxu0 %v1060
    %1089 = vmatprep.subr.bf16.mxu0 0
    %1090 = vmatpush1.bf16.msra.mxu0 %v1059
    %1091 = vmatprep.subr.bf16.mxu0 0
    %1092 = vmatpush2.bf16.msra.mxu0 0
    %1093 = vmatprep.subr.bf16.mxu0 0
    %1094 = vmatpush2.bf16.msra.mxu0 0
    %1095 = vmatprep.subr.bf16.mxu0 0
    %1096 = vmatpush2.bf16.msra.mxu0 0
    %1097 = vmatprep.subr.bf16.mxu0 0
    %1098 = vmatpush2.bf16.msra.mxu0 0
    %1099 = vmatprep.subr.bf16.mxu0 0
    %1100 = vmatpush2.bf16.msra.mxu0 0
    %1101 = vmatprep.subr.bf16.mxu0 0
    %1102 = vmatpush2.bf16.msra.mxu0 0
    %1103 = vmatprep.subr.bf16.mxu0 0
    %1104 = vmatpush2.bf16.msra.mxu0 0
    %1105 = vmatprep.subr.bf16.mxu0 0
    %1106 = vmatpush2.bf16.msra.mxu0 0
    %1107 = vmatprep.mubr.bf16.mxu0 0
    %1108 = vmatmul.mubr.bf16.gmra.mxu0 %v1003
    %v1109 = vpop.f32.mrf.mxu0
    %v1110 = vadd.f32 %v1025, %v1109
    %v1111 = vpop.f32.mrf.mxu0
    %v1112 = vpop.f32.mrf.mxu0
    %v1113 = vadd.f32 %v1025, %v1112
    %v1114 = vpop.f32.mrf.mxu0
    %1115 = vdwg.mxu0
    %1116 = vst [vmem:[#allocation13] sm:$0xff] %v1110
    %1117 = vst [vmem:[#allocation13 + $0x8] sm:$0xff] %v1113
    // Predicated region
    $region62: #{eeg_classifier_forward.1} parent=1 // pred_check
      _
    $region63: #{eeg_classifier_forward.1} parent=1 // pred_check_branch
      %1119 = sbr.rel (0) target = $region65
    $region64: #{eeg_classifier_forward.1} parent=1 // pred_region
      %s1121 = ssub.s32 256, 256
      %1122 = vsyncadd [#allocation4], %s1121
      %s1123 = sshll.u32 [#allocation13], 4
      %s1124 = int_to_ptr.vmem [resolvable:$true] %s1123
      %1129 = dma.vmem_to_hbm [thread:$0]  %s1124, 256, %s9, [#allocation4], 128, 128, 8
    $region65: #{eeg_classifier_forward.1} parent=1 // pred_fallthru
      _
    // Predicated region
    $region66: #{eeg_classifier_forward.1} parent=1 // pred_check
      _
    $region67: #{eeg_classifier_forward.1} parent=1 // pred_check_branch
      %1131 = sbr.rel (0) target = $region69
    $region68: #{eeg_classifier_forward.1} parent=1 // pred_region
      %1132 = dma.done [#allocation4], 256
    $region69: #{eeg_classifier_forward.1} parent=1 // pred_fallthru
      _
    %1133 = vsyncpa [#allocation3], 1
    %1134 = vsyncpa [#allocation6], 1
    %1135 = vsyncpa [#allocation9], 1
    %1136 = vsyncpa [#allocation12], 1
    %1137 = vsyncpa [#allocation4], 1

</llo_original>
